<compile_context>
chip_gen: v7x
topology: tpu7x:2x2x1
jax: 0.10.0
libtpu: 0.0.40
codegen_flags: <defaults>
</compile_context>

<pallas_src>
import functools

import jax
import jax.numpy as jnp
from jax.experimental import pallas as pl
from jax.experimental.pallas import tpu as pltpu


def _round_up(x, n):
  return ((x + n - 1) // n) * n


def _anglenet_kernel(num_blocks, compute_dtype, has_init, *refs):
  if has_init:
    (x_ref, xi_ref, wp_ref, wpi_ref, bp_ref,
     w1s_ref, b1s_ref, w2s_ref, b2s_ref, wg_ref, bg_ref, out_ref) = refs
  else:
    (x_ref, wp_ref, bp_ref,
     w1s_ref, b1s_ref, w2s_ref, b2s_ref, wg_ref, bg_ref, out_ref) = refs

  f32 = jnp.float32
  cd = compute_dtype
  relu = jax.nn.relu

  # act = projection(relu(x)) [+ projection_init(relu(x_init))] + bias
  # relu on the big (tm, dim) tile runs in compute_dtype; dots accumulate f32.
  x = relu(x_ref[...].astype(cd))
  act = jnp.dot(x, wp_ref[...], preferred_element_type=f32)
  if has_init:
    xi = relu(xi_ref[...].astype(cd))
    act = act + jnp.dot(xi, wpi_ref[...], preferred_element_type=f32)
  act = act + bp_ref[...]            # bp holds (bp + bpi) when init is present

  # Residual MLP blocks: act = act + W2(relu(W1(relu(act))))
  # The accumulator / biases / relus stay f32; matmul operands in compute_dtype.
  for blk in range(num_blocks):
    h = relu(act).astype(cd)
    h = jnp.dot(h, w1s_ref[blk], preferred_element_type=f32) + b1s_ref[blk]
    h = relu(h).astype(cd)
    h = jnp.dot(h, w2s_ref[blk], preferred_element_type=f32) + b2s_ref[blk]
    act = act + h

  # angles_flat (lane-padded to 128) = to_groups(relu(act))
  out = jnp.dot(relu(act).astype(cd), wg_ref[...],
                preferred_element_type=f32) + bg_ref[...]
  out_ref[...] = out.astype(out_ref.dtype)


def init_anglenet_params(key, dim, channel=128, num_blocks=2, dtype=jnp.float32):
  ks = jax.random.split(key, 6 + 2 * num_blocks)
  def lin(k, fan_in, fan_out):
    bound = 1.0 / (fan_in ** 0.5)
    kw, kb = jax.random.split(k)
    w = jax.random.uniform(kw, (fan_in, fan_out), dtype, -bound, bound)
    b = jax.random.uniform(kb, (1, fan_out), dtype, -bound, bound)
    return w, b
  wp, bp = lin(ks[0], dim, channel)
  wpi, bpi = lin(ks[1], dim, channel)
  w1s, b1s, w2s, b2s = [], [], [], []
  for i in range(num_blocks):
    w1, b1 = lin(ks[2 + 2 * i], channel, channel)
    w2, b2 = lin(ks[3 + 2 * i], channel, channel)
    w1s.append(w1); b1s.append(b1); w2s.append(w2); b2s.append(b2)
  wg, bg = lin(ks[-1], channel, 14)
  return dict(
      wp=wp, bp=bp, wpi=wpi, bpi=bpi,
      w1s=jnp.stack(w1s), b1s=jnp.stack(b1s),
      w2s=jnp.stack(w2s), b2s=jnp.stack(b2s),
      wg=wg, bg=bg)


def angle_net_forward(params, single_repr, single_repr_init=None,
                      tm=1024, compute_dtype=jnp.bfloat16):
  *lead, dim = single_repr.shape
  channel = params["wp"].shape[1]
  num_blocks = params["w1s"].shape[0]
  n_groups = params["wg"].shape[1]                 # 14
  out_pad = _round_up(n_groups, 128)               # lane-dense output width (128)
  has_init = single_repr_init is not None

  cd = compute_dtype
  exact_f32 = jnp.dtype(cd) == jnp.dtype(jnp.float32)
  out_store_dtype = jnp.float32 if exact_f32 else jnp.dtype(cd)

  x = single_repr.reshape(-1, dim)
  m = x.shape[0]

  # ---- row-tile selection ---------------------------------------------------
  tm = int(tm)
  if m <= 512:
    # Small problem: one tile -> one grid step, no forced-extra-step overhead.
    tm_eff = _round_up(m, 8)
  else:
    # >= 4 grid steps (v7x: 2 TensorCores x >= 2 steps each keeps per-core
    # double-buffering alive); tiles as large as tm to amortize step overhead.
    tm_eff = min(tm, _round_up(pl.cdiv(m, 4), 8))
    n_steps = pl.cdiv(m, tm_eff)
    if n_steps > 1 and n_steps % 2 == 1:           # prefer a balanced 2-TC split
      tm_eff = _round_up(pl.cdiv(m, n_steps + 1), 8)

  # VMEM budget guard: 2 buffers per row-tiled input + 2 output buffers must fit
  # under the smallest default scoped VMEM (16 MiB v5e; v7x has 64 MiB physical).
  n_row_inputs = 2 if has_init else 1
  bytes_per_row = (n_row_inputs * dim * x.dtype.itemsize * 2
                   + out_pad * jnp.dtype(out_store_dtype).itemsize * 2)
  vmem_budget = 12 << 20
  tm_eff = max(8, min(tm_eff, (vmem_budget // max(bytes_per_row, 1)) // 8 * 8))

  grid = (pl.cdiv(m, tm_eff),)

  # ---- operands ---------------------------------------------------------------
  # Lane-dense to_groups weights (pad 14 -> 128 output lanes -> unmasked vst).
  wg_pad = jnp.pad(params["wg"], ((0, 0), (0, out_pad - n_groups)))
  bg_pad = jnp.pad(params["bg"], ((0, 0), (0, out_pad - n_groups)))

  # Matmul operands in compute_dtype (bf16 MXU-native); biases stay f32.
  wp_c = params["wp"].astype(cd)
  w1s_c = params["w1s"].astype(cd)
  w2s_c = params["w2s"].astype(cd)
  wg_c = wg_pad.astype(cd)
  b1s_f = params["b1s"].astype(jnp.float32)
  b2s_f = params["b2s"].astype(jnp.float32)
  bg_f = bg_pad.astype(jnp.float32)

  full = lambda *shape: pl.BlockSpec(shape, lambda i: (0,) * len(shape))
  row_spec = pl.BlockSpec((tm_eff, dim), lambda i: (i, 0))

  if has_init:
    xi = single_repr_init.reshape(-1, dim)
    wpi_c = params["wpi"].astype(cd)
    bp_f = (params["bp"] + params["bpi"]).astype(jnp.float32)
    inputs = (x, xi, wp_c, wpi_c, bp_f,
              w1s_c, b1s_f, w2s_c, b2s_f, wg_c, bg_f)
    in_specs = [
        row_spec, row_spec,
        full(dim, channel), full(dim, channel), full(1, channel),
        full(num_blocks, channel, channel), full(num_blocks, 1, channel),
        full(num_blocks, channel, channel), full(num_blocks, 1, channel),
        full(channel, out_pad), full(1, out_pad),
    ]
  else:
    bp_f = params["bp"].astype(jnp.float32)
    inputs = (x, wp_c, bp_f, w1s_c, b1s_f, w2s_c, b2s_f, wg_c, bg_f)
    in_specs = [
        row_spec,
        full(dim, channel), full(1, channel),
        full(num_blocks, channel, channel), full(num_blocks, 1, channel),
        full(num_blocks, channel, channel), full(num_blocks, 1, channel),
        full(channel, out_pad), full(1, out_pad),
    ]

  k_total = (2 if has_init else 1) * dim
  flops = 2 * m * (k_total * channel
                   + num_blocks * 2 * channel * channel
                   + channel * out_pad)
  bytes_accessed = (
      n_row_inputs * m * dim * x.dtype.itemsize
      + m * out_pad * jnp.dtype(out_store_dtype).itemsize
      + sum(int(a.size) * a.dtype.itemsize for a in inputs[n_row_inputs:]))
  cost = pl.CostEstimate(flops=flops, transcendentals=0,
                         bytes_accessed=bytes_accessed)

  kernel = functools.partial(_anglenet_kernel, num_blocks, cd, has_init)
  out_flat = pl.pallas_call(
      kernel,
      out_shape=jax.ShapeDtypeStruct((m, out_pad), out_store_dtype),
      grid_spec=pltpu.PrefetchScalarGridSpec(
          num_scalar_prefetch=0,
          grid=grid,
          in_specs=in_specs,
          out_specs=pl.BlockSpec((tm_eff, out_pad), lambda i: (i, 0)),
      ),
      compiler_params=pltpu.CompilerParams(
          dimension_semantics=("parallel",)),
      cost_estimate=cost,
  )(*inputs)

  out = out_flat[:, :n_groups].astype(single_repr.dtype)
  # rearrange('... (n d) -> ... n d', d=2)
  return out.reshape(*lead, n_groups // 2, 2)


def angle_net_reference(params, single_repr, single_repr_init=None):
  relu = jax.nn.relu
  act = relu(single_repr) @ params["wp"] + params["bp"][0]
  if single_repr_init is not None:
    act = act + (relu(single_repr_init) @ params["wpi"] + params["bpi"][0])
  for blk in range(params["w1s"].shape[0]):
    h = relu(act)
    h = h @ params["w1s"][blk] + params["b1s"][blk][0]
    h = relu(h)
    h = h @ params["w2s"][blk] + params["b2s"][blk][0]
    act = act + h
  out = relu(act) @ params["wg"] + params["bg"][0]
  return out.reshape(*single_repr.shape[:-1], 7, 2)


if __name__ == "__main__":
  key = jax.random.PRNGKey(0)
  k_par, k_x, k_xi = jax.random.split(key, 3)

  batch, seq, dim, channel, num_blocks = 2, 8, 32, 128, 2
  params = init_anglenet_params(k_par, dim, channel, num_blocks)

  single_repr = jax.random.normal(k_x, (batch, seq, dim), jnp.float32)
  single_repr_init = jax.random.normal(k_xi, (batch, seq, dim), jnp.float32)

  ref = angle_net_reference(params, single_repr, single_repr_init)
  ref_noinit = angle_net_reference(params, single_repr)

  # Exact-precision path (f32 matmuls, f32 store) — tight tolerance.
  angles_f32 = jax.block_until_ready(
      angle_net_forward(params, single_repr, single_repr_init,
                        compute_dtype=jnp.float32))
  assert angles_f32.shape == (batch, seq, 7, 2), angles_f32.shape
  assert jnp.allclose(angles_f32, ref, atol=1e-4, rtol=1e-4), (
      float(jnp.max(jnp.abs(angles_f32 - ref))))

  # Default fast path (bf16 matmuls/store, f32 accumulate) — relaxed tolerance.
  angles = jax.block_until_ready(
      angle_net_forward(params, single_repr, single_repr_init))
  assert angles.shape == (batch, seq, 7, 2), angles.shape
  assert jnp.allclose(angles, ref, atol=5e-2, rtol=5e-2), (
      float(jnp.max(jnp.abs(angles - ref))))

  # No-init path (only one row-tiled input; no dummy zero tensor built or DMA'd).
  angles_noinit = jax.block_until_ready(angle_net_forward(params, single_repr))
  assert angles_noinit.shape == (batch, seq, 7, 2), angles_noinit.shape
  assert jnp.allclose(angles_noinit, ref_noinit, atol=5e-2, rtol=5e-2), (
      float(jnp.max(jnp.abs(angles_noinit - ref_noinit))))

  print("KERNEL_OK")
</pallas_src>

<mosaic_0001>
module attributes {stable_mosaic.version = 11 : i64} {
  func.func @_anglenet_kernel(%arg0: i32, %arg1: memref<16x32xf32, #tpu.memory_space<vmem>>, %arg2: memref<16x32xf32, #tpu.memory_space<vmem>>, %arg3: memref<32x128xf32, #tpu.memory_space<vmem>>, %arg4: memref<32x128xf32, #tpu.memory_space<vmem>>, %arg5: memref<1x128xf32, #tpu.memory_space<vmem>>, %arg6: memref<2x128x128xf32, #tpu.memory_space<vmem>>, %arg7: memref<2x1x128xf32, #tpu.memory_space<vmem>>, %arg8: memref<2x128x128xf32, #tpu.memory_space<vmem>>, %arg9: memref<2x1x128xf32, #tpu.memory_space<vmem>>, %arg10: memref<128x128xf32, #tpu.memory_space<vmem>>, %arg11: memref<1x128xf32, #tpu.memory_space<vmem>>, %arg12: memref<16x128xf32, #tpu.memory_space<vmem>>) attributes {dimension_semantics = [#tpu.dimension_semantics<parallel>], iteration_bounds = array<i64: 1>, scalar_prefetch = 0 : i64, scratch_operands = 0 : i64, tpu.core_type = #tpu.core_type<tc>, window_params = [{transform_indices = @transform_0, window_bounds = array<i64: 16, 32>}, {transform_indices = @transform_1, window_bounds = array<i64: 16, 32>}, {pipeline_mode = #tpu.pipeline_mode<synchronous>, transform_indices = @transform_2, window_bounds = array<i64: 32, 128>}, {pipeline_mode = #tpu.pipeline_mode<synchronous>, transform_indices = @transform_3, window_bounds = array<i64: 32, 128>}, {pipeline_mode = #tpu.pipeline_mode<synchronous>, transform_indices = @transform_4, window_bounds = array<i64: 1, 128>}, {pipeline_mode = #tpu.pipeline_mode<synchronous>, transform_indices = @transform_5, window_bounds = array<i64: 2, 128, 128>}, {pipeline_mode = #tpu.pipeline_mode<synchronous>, transform_indices = @transform_6, window_bounds = array<i64: 2, 1, 128>}, {pipeline_mode = #tpu.pipeline_mode<synchronous>, transform_indices = @transform_7, window_bounds = array<i64: 2, 128, 128>}, {pipeline_mode = #tpu.pipeline_mode<synchronous>, transform_indices = @transform_8, window_bounds = array<i64: 2, 1, 128>}, {pipeline_mode = #tpu.pipeline_mode<synchronous>, transform_indices = @transform_9, window_bounds = array<i64: 128, 128>}, {pipeline_mode = #tpu.pipeline_mode<synchronous>, transform_indices = @transform_10, window_bounds = array<i64: 1, 128>}, {transform_indices = @transform_11, window_bounds = array<i64: 16, 128>}]} {
    %c0 = arith.constant 0 : index
    %c0_0 = arith.constant 0 : index
    %0 = vector.load %arg1[%c0, %c0_0] : memref<16x32xf32, #tpu.memory_space<vmem>>, vector<16x32xf32>
    %cst = arith.constant 0.000000e+00 : f32
    %1 = vector.broadcast %cst : f32 to vector<16x32xf32>
    %2 = arith.maximumf %0, %1 : vector<16x32xf32>
    %c0_1 = arith.constant 0 : index
    %c0_2 = arith.constant 0 : index
    %3 = vector.load %arg3[%c0_1, %c0_2] : memref<32x128xf32, #tpu.memory_space<vmem>>, vector<32x128xf32>
    %cst_3 = arith.constant dense<0.000000e+00> : vector<16x128xf32>
    %4 = tpu.matmul %2, %3, %cst_3 {dimension_numbers = #tpu.dot_dimension_numbers<[1], [0], [0], [1], [0, 0, 1, 1], [], []>} : vector<16x32xf32>, vector<32x128xf32>, vector<16x128xf32> -> vector<16x128xf32>
    %c0_4 = arith.constant 0 : index
    %c0_5 = arith.constant 0 : index
    %5 = vector.load %arg2[%c0_4, %c0_5] : memref<16x32xf32, #tpu.memory_space<vmem>>, vector<16x32xf32>
    %cst_6 = arith.constant 0.000000e+00 : f32
    %6 = vector.broadcast %cst_6 : f32 to vector<16x32xf32>
    %7 = arith.maximumf %5, %6 : vector<16x32xf32>
    %c0_7 = arith.constant 0 : index
    %c0_8 = arith.constant 0 : index
    %8 = vector.load %arg4[%c0_7, %c0_8] : memref<32x128xf32, #tpu.memory_space<vmem>>, vector<32x128xf32>
    %cst_9 = arith.constant dense<0.000000e+00> : vector<16x128xf32>
    %9 = tpu.matmul %7, %8, %cst_9 {dimension_numbers = #tpu.dot_dimension_numbers<[1], [0], [0], [1], [0, 0, 1, 1], [], []>} : vector<16x32xf32>, vector<32x128xf32>, vector<16x128xf32> -> vector<16x128xf32>
    %10 = arith.addf %4, %9 : vector<16x128xf32>
    %c0_10 = arith.constant 0 : index
    %c0_11 = arith.constant 0 : index
    %11 = vector.load %arg5[%c0_10, %c0_11] : memref<1x128xf32, #tpu.memory_space<vmem>>, vector<1x128xf32>
    %12 = vector.broadcast %11 : vector<1x128xf32> to vector<16x128xf32>
    %13 = arith.addf %10, %12 : vector<16x128xf32>
    %cst_12 = arith.constant 0.000000e+00 : f32
    %14 = vector.broadcast %cst_12 : f32 to vector<16x128xf32>
    %15 = arith.maximumf %13, %14 : vector<16x128xf32>
    %c0_13 = arith.constant 0 : index
    %c0_14 = arith.constant 0 : index
    %c0_15 = arith.constant 0 : index
    %16 = vector.load %arg6[%c0_13, %c0_14, %c0_15] : memref<2x128x128xf32, #tpu.memory_space<vmem>>, vector<1x128x128xf32>
    %17 = vector.shape_cast %16 : vector<1x128x128xf32> to vector<128x128xf32>
    %cst_16 = arith.constant dense<0.000000e+00> : vector<16x128xf32>
    %18 = tpu.matmul %15, %17, %cst_16 {dimension_numbers = #tpu.dot_dimension_numbers<[1], [0], [0], [1], [0, 0, 1, 1], [], []>} : vector<16x128xf32>, vector<128x128xf32>, vector<16x128xf32> -> vector<16x128xf32>
    %c0_17 = arith.constant 0 : index
    %c0_18 = arith.constant 0 : index
    %c0_19 = arith.constant 0 : index
    %19 = vector.load %arg7[%c0_17, %c0_18, %c0_19] : memref<2x1x128xf32, #tpu.memory_space<vmem>>, vector<1x1x128xf32>
    %20 = vector.shape_cast %19 : vector<1x1x128xf32> to vector<1x128xf32>
    %21 = vector.broadcast %20 : vector<1x128xf32> to vector<16x128xf32>
    %22 = arith.addf %18, %21 : vector<16x128xf32>
    %cst_20 = arith.constant 0.000000e+00 : f32
    %23 = vector.broadcast %cst_20 : f32 to vector<16x128xf32>
    %24 = arith.maximumf %22, %23 : vector<16x128xf32>
    %c0_21 = arith.constant 0 : index
    %c0_22 = arith.constant 0 : index
    %c0_23 = arith.constant 0 : index
    %25 = vector.load %arg8[%c0_21, %c0_22, %c0_23] : memref<2x128x128xf32, #tpu.memory_space<vmem>>, vector<1x128x128xf32>
    %26 = vector.shape_cast %25 : vector<1x128x128xf32> to vector<128x128xf32>
    %cst_24 = arith.constant dense<0.000000e+00> : vector<16x128xf32>
    %27 = tpu.matmul %24, %26, %cst_24 {dimension_numbers = #tpu.dot_dimension_numbers<[1], [0], [0], [1], [0, 0, 1, 1], [], []>} : vector<16x128xf32>, vector<128x128xf32>, vector<16x128xf32> -> vector<16x128xf32>
    %c0_25 = arith.constant 0 : index
    %c0_26 = arith.constant 0 : index
    %c0_27 = arith.constant 0 : index
    %28 = vector.load %arg9[%c0_25, %c0_26, %c0_27] : memref<2x1x128xf32, #tpu.memory_space<vmem>>, vector<1x1x128xf32>
    %29 = vector.shape_cast %28 : vector<1x1x128xf32> to vector<1x128xf32>
    %30 = vector.broadcast %29 : vector<1x128xf32> to vector<16x128xf32>
    %31 = arith.addf %27, %30 : vector<16x128xf32>
    %32 = arith.addf %13, %31 : vector<16x128xf32>
    %cst_28 = arith.constant 0.000000e+00 : f32
    %33 = vector.broadcast %cst_28 : f32 to vector<16x128xf32>
    %34 = arith.maximumf %32, %33 : vector<16x128xf32>
    %c1 = arith.constant 1 : index
    %c0_29 = arith.constant 0 : index
    %c0_30 = arith.constant 0 : index
    %35 = vector.load %arg6[%c1, %c0_29, %c0_30] : memref<2x128x128xf32, #tpu.memory_space<vmem>>, vector<1x128x128xf32>
    %36 = vector.shape_cast %35 : vector<1x128x128xf32> to vector<128x128xf32>
    %cst_31 = arith.constant dense<0.000000e+00> : vector<16x128xf32>
    %37 = tpu.matmul %34, %36, %cst_31 {dimension_numbers = #tpu.dot_dimension_numbers<[1], [0], [0], [1], [0, 0, 1, 1], [], []>} : vector<16x128xf32>, vector<128x128xf32>, vector<16x128xf32> -> vector<16x128xf32>
    %c1_32 = arith.constant 1 : index
    %c0_33 = arith.constant 0 : index
    %c0_34 = arith.constant 0 : index
    %38 = vector.load %arg7[%c1_32, %c0_33, %c0_34] : memref<2x1x128xf32, #tpu.memory_space<vmem>>, vector<1x1x128xf32>
    %39 = vector.shape_cast %38 : vector<1x1x128xf32> to vector<1x128xf32>
    %40 = vector.broadcast %39 : vector<1x128xf32> to vector<16x128xf32>
    %41 = arith.addf %37, %40 : vector<16x128xf32>
    %cst_35 = arith.constant 0.000000e+00 : f32
    %42 = vector.broadcast %cst_35 : f32 to vector<16x128xf32>
    %43 = arith.maximumf %41, %42 : vector<16x128xf32>
    %c1_36 = arith.constant 1 : index
    %c0_37 = arith.constant 0 : index
    %c0_38 = arith.constant 0 : index
    %44 = vector.load %arg8[%c1_36, %c0_37, %c0_38] : memref<2x128x128xf32, #tpu.memory_space<vmem>>, vector<1x128x128xf32>
    %45 = vector.shape_cast %44 : vector<1x128x128xf32> to vector<128x128xf32>
    %cst_39 = arith.constant dense<0.000000e+00> : vector<16x128xf32>
    %46 = tpu.matmul %43, %45, %cst_39 {dimension_numbers = #tpu.dot_dimension_numbers<[1], [0], [0], [1], [0, 0, 1, 1], [], []>} : vector<16x128xf32>, vector<128x128xf32>, vector<16x128xf32> -> vector<16x128xf32>
    %c1_40 = arith.constant 1 : index
    %c0_41 = arith.constant 0 : index
    %c0_42 = arith.constant 0 : index
    %47 = vector.load %arg9[%c1_40, %c0_41, %c0_42] : memref<2x1x128xf32, #tpu.memory_space<vmem>>, vector<1x1x128xf32>
    %48 = vector.shape_cast %47 : vector<1x1x128xf32> to vector<1x128xf32>
    %49 = vector.broadcast %48 : vector<1x128xf32> to vector<16x128xf32>
    %50 = arith.addf %46, %49 : vector<16x128xf32>
    %51 = arith.addf %32, %50 : vector<16x128xf32>
    %cst_43 = arith.constant 0.000000e+00 : f32
    %52 = vector.broadcast %cst_43 : f32 to vector<16x128xf32>
    %53 = arith.maximumf %51, %52 : vector<16x128xf32>
    %c0_44 = arith.constant 0 : index
    %c0_45 = arith.constant 0 : index
    %54 = vector.load %arg10[%c0_44, %c0_45] : memref<128x128xf32, #tpu.memory_space<vmem>>, vector<128x128xf32>
    %cst_46 = arith.constant dense<0.000000e+00> : vector<16x128xf32>
    %55 = tpu.matmul %53, %54, %cst_46 {dimension_numbers = #tpu.dot_dimension_numbers<[1], [0], [0], [1], [0, 0, 1, 1], [], []>} : vector<16x128xf32>, vector<128x128xf32>, vector<16x128xf32> -> vector<16x128xf32>
    %c0_47 = arith.constant 0 : index
    %c0_48 = arith.constant 0 : index
    %56 = vector.load %arg11[%c0_47, %c0_48] : memref<1x128xf32, #tpu.memory_space<vmem>>, vector<1x128xf32>
    %57 = vector.broadcast %56 : vector<1x128xf32> to vector<16x128xf32>
    %58 = arith.addf %55, %57 : vector<16x128xf32>
    %c0_49 = arith.constant 0 : index
    %c0_50 = arith.constant 0 : index
    %59 = vector.load %arg12[%c0_49, %c0_50] : memref<16x128xf32, #tpu.memory_space<vmem>>, vector<16x128xf32>
    tpu.vector_store %arg12[%c0_49, %c0_50], %58 {strides = array<i32>} : memref<16x128xf32, #tpu.memory_space<vmem>>, vector<16x128xf32>,
    return
  }
  func.func @transform_0(%arg0: i32) -> (i32, i32) {
    %c0_i32 = arith.constant 0 : i32
    %c0_i32_0 = arith.constant 0 : i32
    return %arg0, %c0_i32 : i32, i32
  }
  func.func @transform_1(%arg0: i32) -> (i32, i32) {
    %c0_i32 = arith.constant 0 : i32
    %c0_i32_0 = arith.constant 0 : i32
    return %arg0, %c0_i32 : i32, i32
  }
  func.func @transform_2(%arg0: i32) -> (i32, i32) {
    %c0_i32 = arith.constant 0 : i32
    %c0_i32_0 = arith.constant 0 : i32
    %c0_i32_1 = arith.constant 0 : i32
    return %c0_i32, %c0_i32_0 : i32, i32
  }
  func.func @transform_3(%arg0: i32) -> (i32, i32) {
    %c0_i32 = arith.constant 0 : i32
    %c0_i32_0 = arith.constant 0 : i32
    %c0_i32_1 = arith.constant 0 : i32
    return %c0_i32, %c0_i32_0 : i32, i32
  }
  func.func @transform_4(%arg0: i32) -> (i32, i32) {
    %c0_i32 = arith.constant 0 : i32
    %c0_i32_0 = arith.constant 0 : i32
    %c0_i32_1 = arith.constant 0 : i32
    return %c0_i32, %c0_i32_0 : i32, i32
  }
  func.func @transform_5(%arg0: i32) -> (i32, i32, i32) {
    %c0_i32 = arith.constant 0 : i32
    %c0_i32_0 = arith.constant 0 : i32
    %c0_i32_1 = arith.constant 0 : i32
    %c0_i32_2 = arith.constant 0 : i32
    return %c0_i32, %c0_i32_0, %c0_i32_1 : i32, i32, i32
  }
  func.func @transform_6(%arg0: i32) -> (i32, i32, i32) {
    %c0_i32 = arith.constant 0 : i32
    %c0_i32_0 = arith.constant 0 : i32
    %c0_i32_1 = arith.constant 0 : i32
    %c0_i32_2 = arith.constant 0 : i32
    return %c0_i32, %c0_i32_0, %c0_i32_1 : i32, i32, i32
  }
  func.func @transform_7(%arg0: i32) -> (i32, i32, i32) {
    %c0_i32 = arith.constant 0 : i32
    %c0_i32_0 = arith.constant 0 : i32
    %c0_i32_1 = arith.constant 0 : i32
    %c0_i32_2 = arith.constant 0 : i32
    return %c0_i32, %c0_i32_0, %c0_i32_1 : i32, i32, i32
  }
  func.func @transform_8(%arg0: i32) -> (i32, i32, i32) {
    %c0_i32 = arith.constant 0 : i32
    %c0_i32_0 = arith.constant 0 : i32
    %c0_i32_1 = arith.constant 0 : i32
    %c0_i32_2 = arith.constant 0 : i32
    return %c0_i32, %c0_i32_0, %c0_i32_1 : i32, i32, i32
  }
  func.func @transform_9(%arg0: i32) -> (i32, i32) {
    %c0_i32 = arith.constant 0 : i32
    %c0_i32_0 = arith.constant 0 : i32
    %c0_i32_1 = arith.constant 0 : i32
    return %c0_i32, %c0_i32_0 : i32, i32
  }
  func.func @transform_10(%arg0: i32) -> (i32, i32) {
    %c0_i32 = arith.constant 0 : i32
    %c0_i32_0 = arith.constant 0 : i32
    %c0_i32_1 = arith.constant 0 : i32
    return %c0_i32, %c0_i32_0 : i32, i32
  }
  func.func @transform_11(%arg0: i32) -> (i32, i32) {
    %c0_i32 = arith.constant 0 : i32
    %c0_i32_0 = arith.constant 0 : i32
    return %arg0, %c0_i32 : i32, i32
  }
}

</mosaic_0001>

<llo_original>
// kernel: tpu_custom_call.1
$region0: #{tpu_custom_call.1}
  #allocation0 [shape = 'u32[]', space=smem, size = 0x4, offset = 0x4, fixed_abs, tag = 'smem constant byte address 0x4 - core index']
  #allocation1 [shape = 'u32[144,128]{1,0:T(1,128)}', space=vmem, size = 0x12000, scoped, tag = 'internal scratch']
  %s0 = inlined_call_operand.hbm [shape: f32[16,32], index: 0, kind: input, shape index: {}]
  %s1 = inlined_call_operand.hbm [shape: f32[16,32], index: 1, kind: input, shape index: {}]
  %s2 = inlined_call_operand.hbm [shape: f32[32,128], index: 2, kind: input, shape index: {}]
  %s3 = inlined_call_operand.hbm [shape: f32[32,128], index: 3, kind: input, shape index: {}]
  %s4 = inlined_call_operand.vmem [shape: f32[1,128], index: 4, kind: input, shape index: {}]
  %s5 = inlined_call_operand.hbm [shape: f32[2,128,128], index: 5, kind: input, shape index: {}]
  %s6 = inlined_call_operand.vmem [shape: f32[2,1,128], index: 6, kind: input, shape index: {}]
  %s7 = inlined_call_operand.hbm [shape: f32[2,128,128], index: 7, kind: input, shape index: {}]
  %s8 = inlined_call_operand.vmem [shape: f32[2,1,128], index: 8, kind: input, shape index: {}]
  %s9 = inlined_call_operand.hbm [shape: f32[128,128], index: 9, kind: input, shape index: {}]
  %s10 = inlined_call_operand.vmem [shape: f32[1,128], index: 10, kind: input, shape index: {}]
  %s11 = inlined_call_operand.hbm [shape: f32[16,128], index: 11, kind: output, shape index: {}]
  %s12 = sld [smem:[#allocation0]]
  $region82: #{tpu_custom_call.1} parent=0
    _
  %s14 = ssub.s32 1, %s12
  %s15 = scalar_select 0, %s14, %s12
  $region1: #{tpu_custom_call.1} parent=0
    #allocation2 [shape = 'u8[8192]{0}', space=vmem, size = 0x2000, scoped, tag = 'input window, operand 0, single buffered']
    #allocation3 [shape = 's32[1]{0}', space=sflag, size = 0x4, scoped, tag = 'scoped memory for tpu_custom_call.1']
    #allocation4 [shape = 's32[1]{0}', space=sflag, size = 0x4, scoped, tag = 'scoped memory for tpu_custom_call.1']
    #allocation5 [shape = 'u8[8192]{0}', space=vmem, size = 0x2000, scoped, tag = 'input window, operand 1, single buffered']
    #allocation6 [shape = 's32[1]{0}', space=sflag, size = 0x4, scoped, tag = 'scoped memory for tpu_custom_call.1']
    #allocation7 [shape = 'u8[16384]{0}', space=vmem, size = 0x4000, scoped, tag = 'input window, operand 2, single buffered']
    #allocation8 [shape = 'u8[16384]{0}', space=vmem, size = 0x4000, scoped, tag = 'input window, operand 3, single buffered']
    #allocation9 [shape = 's32[1]{0}', space=sflag, size = 0x4, scoped, tag = 'scoped memory for tpu_custom_call.1']
    #allocation10 [shape = 'u8[131072]{0}', space=vmem, size = 0x20000, scoped, tag = 'input window, operand 5, single buffered']
    #allocation11 [shape = 'u8[131072]{0}', space=vmem, size = 0x20000, scoped, tag = 'input window, operand 7, single buffered']
    #allocation12 [shape = 's32[1]{0}', space=sflag, size = 0x4, scoped, tag = 'scoped memory for tpu_custom_call.1']
    #allocation13 [shape = 'u8[65536]{0}', space=vmem, size = 0x10000, scoped, tag = 'input window, operand 9, single buffered']
    #allocation14 [shape = 'u8[8192]{0}', space=vmem, size = 0x2000, scoped, tag = 'output window, operand 0, single buffered']
    %16 = vsyncpa [#allocation3], 0
    %17 = vsyncpa [#allocation6], 0
    %18 = vsyncpa [#allocation9], 0
    %19 = vsyncpa [#allocation12], 0
    %20 = vsyncpa [#allocation4], 0
    // Predicated region
    $region2: #{tpu_custom_call.1} parent=1 // pred_check
      _
    $region3: #{tpu_custom_call.1} parent=1 // pred_check_branch
      %22 = sbr.rel (0) target = $region5
    $region4: #{tpu_custom_call.1} parent=1 // pred_region
      %s24 = ssub.s32 256, 256
      %25 = vsyncadd [#allocation3], %s24
      %s26 = sshll.u32 [#allocation2], 4
      %s27 = int_to_ptr.vmem [resolvable:$true] %s26
      %32 = dma.hbm_to_vmem [thread:$0]  %s0, 256, %s27, [#allocation3], 128, 128, 8
    $region5: #{tpu_custom_call.1} parent=1 // pred_fallthru
      _
    // Predicated region
    $region6: #{tpu_custom_call.1} parent=1 // pred_check
      _
    $region7: #{tpu_custom_call.1} parent=1 // pred_check_branch
      %34 = sbr.rel (0) target = $region9
    $region8: #{tpu_custom_call.1} parent=1 // pred_region
      %s36 = ssub.s32 256, 256
      %37 = vsyncadd [#allocation6], %s36
      %s38 = sshll.u32 [#allocation5], 4
      %s39 = int_to_ptr.vmem [resolvable:$true] %s38
      %44 = dma.hbm_to_vmem [thread:$0]  %s1, 256, %s39, [#allocation6], 128, 128, 8
    $region9: #{tpu_custom_call.1} parent=1 // pred_fallthru
      _
    // Predicated region
    $region10: #{tpu_custom_call.1} parent=1 // pred_check
      _
    $region11: #{tpu_custom_call.1} parent=1 // pred_check_branch
      %46 = sbr.rel (0) target = $region13
    $region12: #{tpu_custom_call.1} parent=1 // pred_region
      %s48 = ssub.s32 512, 512
      %49 = vsyncadd [#allocation6], %s48
      %s50 = sshll.u32 [#allocation7], 4
      %s51 = int_to_ptr.vmem [resolvable:$true] %s50
      %56 = dma.hbm_to_vmem [thread:$0]  %s2, 512, %s51, [#allocation6], 128, 128, 8
    $region13: #{tpu_custom_call.1} parent=1 // pred_fallthru
      _
    // Predicated region
    $region14: #{tpu_custom_call.1} parent=1 // pred_check
      _
    $region15: #{tpu_custom_call.1} parent=1 // pred_check_branch
      %58 = sbr.rel (0) target = $region17
    $region16: #{tpu_custom_call.1} parent=1 // pred_region
      %s60 = ssub.s32 512, 512
      %61 = vsyncadd [#allocation9], %s60
      %s62 = sshll.u32 [#allocation8], 4
      %s63 = int_to_ptr.vmem [resolvable:$true] %s62
      %68 = dma.hbm_to_vmem [thread:$0]  %s3, 512, %s63, [#allocation9], 128, 128, 8
    $region17: #{tpu_custom_call.1} parent=1 // pred_fallthru
      _
    // Predicated region
    $region18: #{tpu_custom_call.1} parent=1 // pred_check
      _
    $region19: #{tpu_custom_call.1} parent=1 // pred_check_branch
      %70 = sbr.rel (0) target = $region21
    $region20: #{tpu_custom_call.1} parent=1 // pred_region
      _
    $region21: #{tpu_custom_call.1} parent=1 // pred_fallthru
      _
    // Predicated region
    $region22: #{tpu_custom_call.1} parent=1 // pred_check
      _
    $region23: #{tpu_custom_call.1} parent=1 // pred_check_branch
      %72 = sbr.rel (0) target = $region25
    $region24: #{tpu_custom_call.1} parent=1 // pred_region
      %s74 = ssub.s32 4096, 4096
      %75 = vsyncadd [#allocation9], %s74
      %s76 = sshll.u32 [#allocation10], 4
      %s77 = int_to_ptr.vmem [resolvable:$true] %s76
      %82 = dma.hbm_to_vmem [thread:$0]  %s5, 4096, %s77, [#allocation9], 128, 128, 8
    $region25: #{tpu_custom_call.1} parent=1 // pred_fallthru
      _
    // Predicated region
    $region26: #{tpu_custom_call.1} parent=1 // pred_check
      _
    $region27: #{tpu_custom_call.1} parent=1 // pred_check_branch
      %84 = sbr.rel (0) target = $region29
    $region28: #{tpu_custom_call.1} parent=1 // pred_region
      _
    $region29: #{tpu_custom_call.1} parent=1 // pred_fallthru
      _
    // Predicated region
    $region30: #{tpu_custom_call.1} parent=1 // pred_check
      _
    $region31: #{tpu_custom_call.1} parent=1 // pred_check_branch
      %86 = sbr.rel (0) target = $region33
    $region32: #{tpu_custom_call.1} parent=1 // pred_region
      %s88 = ssub.s32 4096, 4096
      %89 = vsyncadd [#allocation12], %s88
      %s90 = sshll.u32 [#allocation11], 4
      %s91 = int_to_ptr.vmem [resolvable:$true] %s90
      %96 = dma.hbm_to_vmem [thread:$0]  %s7, 4096, %s91, [#allocation12], 128, 128, 8
    $region33: #{tpu_custom_call.1} parent=1 // pred_fallthru
      _
    // Predicated region
    $region34: #{tpu_custom_call.1} parent=1 // pred_check
      _
    $region35: #{tpu_custom_call.1} parent=1 // pred_check_branch
      %98 = sbr.rel (0) target = $region37
    $region36: #{tpu_custom_call.1} parent=1 // pred_region
      _
    $region37: #{tpu_custom_call.1} parent=1 // pred_fallthru
      _
    // Predicated region
    $region38: #{tpu_custom_call.1} parent=1 // pred_check
      _
    $region39: #{tpu_custom_call.1} parent=1 // pred_check_branch
      %100 = sbr.rel (0) target = $region41
    $region40: #{tpu_custom_call.1} parent=1 // pred_region
      %s102 = ssub.s32 2048, 2048
      %103 = vsyncadd [#allocation12], %s102
      %s104 = sshll.u32 [#allocation13], 4
      %s105 = int_to_ptr.vmem [resolvable:$true] %s104
      %110 = dma.hbm_to_vmem [thread:$0]  %s9, 2048, %s105, [#allocation12], 128, 128, 8
    $region41: #{tpu_custom_call.1} parent=1 // pred_fallthru
      _
    // Predicated region
    $region42: #{tpu_custom_call.1} parent=1 // pred_check
      _
    $region43: #{tpu_custom_call.1} parent=1 // pred_check_branch
      %112 = sbr.rel (0) target = $region45
    $region44: #{tpu_custom_call.1} parent=1 // pred_region
      _
    $region45: #{tpu_custom_call.1} parent=1 // pred_fallthru
      _
    // Predicated region
    $region46: #{tpu_custom_call.1} parent=1 // pred_check
      _
    $region47: #{tpu_custom_call.1} parent=1 // pred_check_branch
      %114 = sbr.rel (0) target = $region49
    $region48: #{tpu_custom_call.1} parent=1 // pred_region
      %115 = dma.done [#allocation3], 256
    $region49: #{tpu_custom_call.1} parent=1 // pred_fallthru
      _
    // Predicated region
    $region50: #{tpu_custom_call.1} parent=1 // pred_check
      _
    $region51: #{tpu_custom_call.1} parent=1 // pred_check_branch
      %117 = sbr.rel (0) target = $region53
    $region52: #{tpu_custom_call.1} parent=1 // pred_region
      %118 = dma.done [#allocation6], 256
    $region53: #{tpu_custom_call.1} parent=1 // pred_fallthru
      _
    // Predicated region
    $region54: #{tpu_custom_call.1} parent=1 // pred_check
      _
    $region55: #{tpu_custom_call.1} parent=1 // pred_check_branch
      %120 = sbr.rel (0) target = $region57
    $region56: #{tpu_custom_call.1} parent=1 // pred_region
      %121 = dma.done [#allocation6], 512
    $region57: #{tpu_custom_call.1} parent=1 // pred_fallthru
      _
    // Predicated region
    $region58: #{tpu_custom_call.1} parent=1 // pred_check
      _
    $region59: #{tpu_custom_call.1} parent=1 // pred_check_branch
      %123 = sbr.rel (0) target = $region61
    $region60: #{tpu_custom_call.1} parent=1 // pred_region
      %124 = dma.done [#allocation9], 512
    $region61: #{tpu_custom_call.1} parent=1 // pred_fallthru
      _
    // Predicated region
    $region62: #{tpu_custom_call.1} parent=1 // pred_check
      _
    $region63: #{tpu_custom_call.1} parent=1 // pred_check_branch
      %126 = sbr.rel (0) target = $region65
    $region64: #{tpu_custom_call.1} parent=1 // pred_region
      %127 = dma.done [#allocation9], 4096
    $region65: #{tpu_custom_call.1} parent=1 // pred_fallthru
      _
    // Predicated region
    $region66: #{tpu_custom_call.1} parent=1 // pred_check
      _
    $region67: #{tpu_custom_call.1} parent=1 // pred_check_branch
      %129 = sbr.rel (0) target = $region69
    $region68: #{tpu_custom_call.1} parent=1 // pred_region
      %130 = dma.done [#allocation12], 4096
    $region69: #{tpu_custom_call.1} parent=1 // pred_fallthru
      _
    // Predicated region
    $region70: #{tpu_custom_call.1} parent=1 // pred_check
      _
    $region71: #{tpu_custom_call.1} parent=1 // pred_check_branch
      %132 = sbr.rel (0) target = $region73
    $region72: #{tpu_custom_call.1} parent=1 // pred_region
      %133 = dma.done [#allocation12], 2048
    $region73: #{tpu_custom_call.1} parent=1 // pred_fallthru
      _
    %v134 = vld [vmem:[#allocation2] sm:$0xff]
    %v135 = vld [vmem:[#allocation2 + $0x8] sm:$0xff]
    %v136 = vmax.f32 %v134, 0.0
    %v137 = vmax.f32 %v135, 0.0
    %v138 = vld [vmem:[#allocation7] sm:$0xff]
    %v139 = vld [vmem:[#allocation7 + $0x8] sm:$0xff]
    %v140 = vld [vmem:[#allocation7 + $0x10] sm:$0xff]
    %v141 = vld [vmem:[#allocation7 + $0x18] sm:$0xff]
    %v142 = vld [vmem:[#allocation5] sm:$0xff]
    %v143 = vld [vmem:[#allocation5 + $0x8] sm:$0xff]
    %v144 = vmax.f32 %v142, 0.0
    %v145 = vmax.f32 %v143, 0.0
    %v146 = vld [vmem:[#allocation8] sm:$0xff]
    %v147 = vld [vmem:[#allocation8 + $0x8] sm:$0xff]
    %v148 = vld [vmem:[#allocation8 + $0x10] sm:$0xff]
    %v149 = vld [vmem:[#allocation8 + $0x18] sm:$0xff]
    %vm150 = vcmask 261120
    %v152 = vsel %vm150, %v144, 0
    %v155 = vsel %vm150, %v145, 0
    %157 = vmatprep.subr.mxu0 0.0
    %158 = vmatpush1.msra.mxu0 %v146
    %159 = vmatprep.subr.mxu0 0.0
    %160 = vmatpush1.msra.mxu0 %v147
    %161 = vmatprep.subr.mxu0 0.0
    %162 = vmatpush1.msra.mxu0 %v148
    %163 = vmatprep.subr.mxu0 0.0
    %164 = vmatpush1.msra.mxu0 %v149
    %165 = vmatprep.subr.mxu0 0.0
    %166 = vmatpush1.msra.mxu0 0.0
    %167 = vmatprep.subr.mxu0 0.0
    %168 = vmatpush1.msra.mxu0 0.0
    %169 = vmatprep.subr.mxu0 0.0
    %170 = vmatpush1.msra.mxu0 0.0
    %171 = vmatprep.subr.mxu0 0.0
    %172 = vmatpush1.msra.mxu0 0.0
    %173 = vmatprep.subr.mxu0 0.0
    %174 = vmatpush1.msra.mxu0 0.0
    %175 = vmatprep.subr.mxu0 0.0
    %176 = vmatpush1.msra.mxu0 0.0
    %177 = vmatprep.subr.mxu0 0.0
    %178 = vmatpush1.msra.mxu0 0.0
    %179 = vmatprep.subr.mxu0 0.0
    %180 = vmatpush1.msra.mxu0 0.0
    %181 = vmatprep.subr.mxu0 0.0
    %182 = vmatpush1.msra.mxu0 0.0
    %183 = vmatprep.subr.mxu0 0.0
    %184 = vmatpush1.msra.mxu0 0.0
    %185 = vmatprep.subr.mxu0 0.0
    %186 = vmatpush1.msra.mxu0 0.0
    %187 = vmatprep.subr.mxu0 0.0
    %188 = vmatpush1.msra.mxu0 0.0
    %189 = vmatprep.subr.mxu0 0.0
    %190 = vmatpush1.msra.mxu0 0.0
    %191 = vmatprep.subr.mxu0 0.0
    %192 = vmatpush1.msra.mxu0 0.0
    %193 = vmatprep.subr.mxu0 0.0
    %194 = vmatpush1.msra.mxu0 0.0
    %195 = vmatprep.subr.mxu0 0.0
    %196 = vmatpush1.msra.mxu0 0.0
    %197 = vmatprep.subr.mxu0 0.0
    %198 = vmatpush1.msra.mxu0 0.0
    %199 = vmatprep.subr.mxu0 0.0
    %200 = vmatpush1.msra.mxu0 0.0
    %201 = vmatprep.subr.mxu0 0.0
    %202 = vmatpush1.msra.mxu0 0.0
    %203 = vmatprep.subr.mxu0 0.0
    %204 = vmatpush1.msra.mxu0 0.0
    %205 = vmatprep.subr.mxu0 0.0
    %206 = vmatpush1.msra.mxu0 0.0
    %207 = vmatprep.subr.mxu0 0.0
    %208 = vmatpush1.msra.mxu0 0.0
    %209 = vmatprep.subr.mxu0 0.0
    %210 = vmatpush1.msra.mxu0 0.0
    %211 = vmatprep.subr.mxu0 0.0
    %212 = vmatpush1.msra.mxu0 0.0
    %213 = vmatprep.subr.mxu0 0.0
    %214 = vmatpush1.msra.mxu0 0.0
    %215 = vmatprep.subr.mxu0 0.0
    %216 = vmatpush1.msra.mxu0 0.0
    %217 = vmatprep.subr.mxu0 0.0
    %218 = vmatpush1.msra.mxu0 0.0
    %219 = vmatprep.subr.mxu0 0.0
    %220 = vmatpush1.msra.mxu0 0.0
    %221 = vmatprep.mubr.f32.mxu0 0.0
    %222 = vmatmul.mubr.f32.gmra.mrb[0].mxu0 %v152
    %v223 = vpop.f32.mrb[0].mxu0
    %v224 = vadd.f32 0.0, %v223
    %v225 = vpop.f32.mrb[0].mxu0
    %226 = vmatprep.mubr.f32.mxu0 0.0
    %227 = vmatmul.mubr.f32.gmra.mrb[0].mxu0 %v155
    %v228 = vpop.f32.mrb[0].mxu0
    %v229 = vadd.f32 0.0, %v228
    %v230 = vpop.f32.mrb[0].mxu0
    %231 = vdwg.mxu0
    %v233 = vsel %vm150, %v136, 0
    %v236 = vsel %vm150, %v137, 0
    %238 = vmatprep.subr.mxu0 0.0
    %239 = vmatpush1.msra.mxu0 %v138
    %240 = vmatprep.subr.mxu0 0.0
    %241 = vmatpush1.msra.mxu0 %v139
    %242 = vmatprep.subr.mxu0 0.0
    %243 = vmatpush1.msra.mxu0 %v140
    %244 = vmatprep.subr.mxu0 0.0
    %245 = vmatpush1.msra.mxu0 %v141
    %246 = vmatprep.subr.mxu0 0.0
    %247 = vmatpush1.msra.mxu0 0.0
    %248 = vmatprep.subr.mxu0 0.0
    %249 = vmatpush1.msra.mxu0 0.0
    %250 = vmatprep.subr.mxu0 0.0
    %251 = vmatpush1.msra.mxu0 0.0
    %252 = vmatprep.subr.mxu0 0.0
    %253 = vmatpush1.msra.mxu0 0.0
    %254 = vmatprep.subr.mxu0 0.0
    %255 = vmatpush1.msra.mxu0 0.0
    %256 = vmatprep.subr.mxu0 0.0
    %257 = vmatpush1.msra.mxu0 0.0
    %258 = vmatprep.subr.mxu0 0.0
    %259 = vmatpush1.msra.mxu0 0.0
    %260 = vmatprep.subr.mxu0 0.0
    %261 = vmatpush1.msra.mxu0 0.0
    %262 = vmatprep.subr.mxu0 0.0
    %263 = vmatpush1.msra.mxu0 0.0
    %264 = vmatprep.subr.mxu0 0.0
    %265 = vmatpush1.msra.mxu0 0.0
    %266 = vmatprep.subr.mxu0 0.0
    %267 = vmatpush1.msra.mxu0 0.0
    %268 = vmatprep.subr.mxu0 0.0
    %269 = vmatpush1.msra.mxu0 0.0
    %270 = vmatprep.subr.mxu0 0.0
    %271 = vmatpush1.msra.mxu0 0.0
    %272 = vmatprep.subr.mxu0 0.0
    %273 = vmatpush1.msra.mxu0 0.0
    %274 = vmatprep.subr.mxu0 0.0
    %275 = vmatpush1.msra.mxu0 0.0
    %276 = vmatprep.subr.mxu0 0.0
    %277 = vmatpush1.msra.mxu0 0.0
    %278 = vmatprep.subr.mxu0 0.0
    %279 = vmatpush1.msra.mxu0 0.0
    %280 = vmatprep.subr.mxu0 0.0
    %281 = vmatpush1.msra.mxu0 0.0
    %282 = vmatprep.subr.mxu0 0.0
    %283 = vmatpush1.msra.mxu0 0.0
    %284 = vmatprep.subr.mxu0 0.0
    %285 = vmatpush1.msra.mxu0 0.0
    %286 = vmatprep.subr.mxu0 0.0
    %287 = vmatpush1.msra.mxu0 0.0
    %288 = vmatprep.subr.mxu0 0.0
    %289 = vmatpush1.msra.mxu0 0.0
    %290 = vmatprep.subr.mxu0 0.0
    %291 = vmatpush1.msra.mxu0 0.0
    %292 = vmatprep.subr.mxu0 0.0
    %293 = vmatpush1.msra.mxu0 0.0
    %294 = vmatprep.subr.mxu0 0.0
    %295 = vmatpush1.msra.mxu0 0.0
    %296 = vmatprep.subr.mxu0 0.0
    %297 = vmatpush1.msra.mxu0 0.0
    %298 = vmatprep.subr.mxu0 0.0
    %299 = vmatpush1.msra.mxu0 0.0
    %300 = vmatprep.subr.mxu0 0.0
    %301 = vmatpush1.msra.mxu0 0.0
    %302 = vmatprep.mubr.f32.mxu0 0.0
    %303 = vmatmul.mubr.f32.gmra.mrb[0].mxu0 %v233
    %v304 = vpop.f32.mrb[0].mxu0
    %v305 = vadd.f32 %v224, %v304
    %v306 = vpop.f32.mrb[0].mxu0
    %307 = vmatprep.mubr.f32.mxu0 0.0
    %308 = vmatmul.mubr.f32.gmra.mrb[0].mxu0 %v236
    %v309 = vpop.f32.mrb[0].mxu0
    %v310 = vadd.f32 %v229, %v309
    %v311 = vpop.f32.mrb[0].mxu0
    %312 = vdwg.mxu0
    %v313 = vld [vmem:[%s4] sm:$0x1]
    %v315 = vlaneseq
    %v316 = vshrl.u32 %v315, 7
    %v317 = vsub.s32 0, %v316
    %v318 = vrot.slane %v313, %v317
    %v320 = vadd.f32 %v305, %v318
    %v321 = vadd.f32 %v310, %v318
    %v322 = vmax.f32 %v320, 0.0
    %v323 = vmax.f32 %v321, 0.0
    %v324 = vld [vmem:[#allocation10] sm:$0xff]
    %v325 = vld [vmem:[#allocation10 + $0x8] sm:$0xff]
    %v326 = vld [vmem:[#allocation10 + $0x10] sm:$0xff]
    %v327 = vld [vmem:[#allocation10 + $0x18] sm:$0xff]
    %v328 = vld [vmem:[#allocation10 + $0x20] sm:$0xff]
    %v329 = vld [vmem:[#allocation10 + $0x28] sm:$0xff]
    %v330 = vld [vmem:[#allocation10 + $0x30] sm:$0xff]
    %v331 = vld [vmem:[#allocation10 + $0x38] sm:$0xff]
    %v332 = vld [vmem:[#allocation10 + $0x40] sm:$0xff]
    %v333 = vld [vmem:[#allocation10 + $0x48] sm:$0xff]
    %v334 = vld [vmem:[#allocation10 + $0x50] sm:$0xff]
    %v335 = vld [vmem:[#allocation10 + $0x58] sm:$0xff]
    %v336 = vld [vmem:[#allocation10 + $0x60] sm:$0xff]
    %v337 = vld [vmem:[#allocation10 + $0x68] sm:$0xff]
    %v338 = vld [vmem:[#allocation10 + $0x70] sm:$0xff]
    %v339 = vld [vmem:[#allocation10 + $0x78] sm:$0xff]
    %v340 = vld [vmem:[%s6] sm:$0x1]
    %v342 = vlaneseq
    %v343 = vshrl.u32 %v342, 7
    %v344 = vsub.s32 0, %v343
    %v345 = vrot.slane %v340, %v344
    %347 = vmatprep.subr.mxu0 0.0
    %348 = vmatpush1.msra.mxu0 %v324
    %349 = vmatprep.subr.mxu0 0.0
    %350 = vmatpush1.msra.mxu0 %v325
    %351 = vmatprep.subr.mxu0 0.0
    %352 = vmatpush1.msra.mxu0 %v326
    %353 = vmatprep.subr.mxu0 0.0
    %354 = vmatpush1.msra.mxu0 %v327
    %355 = vmatprep.subr.mxu0 0.0
    %356 = vmatpush1.msra.mxu0 %v328
    %357 = vmatprep.subr.mxu0 0.0
    %358 = vmatpush1.msra.mxu0 %v329
    %359 = vmatprep.subr.mxu0 0.0
    %360 = vmatpush1.msra.mxu0 %v330
    %361 = vmatprep.subr.mxu0 0.0
    %362 = vmatpush1.msra.mxu0 %v331
    %363 = vmatprep.subr.mxu0 0.0
    %364 = vmatpush1.msra.mxu0 %v332
    %365 = vmatprep.subr.mxu0 0.0
    %366 = vmatpush1.msra.mxu0 %v333
    %367 = vmatprep.subr.mxu0 0.0
    %368 = vmatpush1.msra.mxu0 %v334
    %369 = vmatprep.subr.mxu0 0.0
    %370 = vmatpush1.msra.mxu0 %v335
    %371 = vmatprep.subr.mxu0 0.0
    %372 = vmatpush1.msra.mxu0 %v336
    %373 = vmatprep.subr.mxu0 0.0
    %374 = vmatpush1.msra.mxu0 %v337
    %375 = vmatprep.subr.mxu0 0.0
    %376 = vmatpush1.msra.mxu0 %v338
    %377 = vmatprep.subr.mxu0 0.0
    %378 = vmatpush1.msra.mxu0 %v339
    %379 = vmatprep.subr.mxu0 0.0
    %380 = vmatpush1.msra.mxu0 0.0
    %381 = vmatprep.subr.mxu0 0.0
    %382 = vmatpush1.msra.mxu0 0.0
    %383 = vmatprep.subr.mxu0 0.0
    %384 = vmatpush1.msra.mxu0 0.0
    %385 = vmatprep.subr.mxu0 0.0
    %386 = vmatpush1.msra.mxu0 0.0
    %387 = vmatprep.subr.mxu0 0.0
    %388 = vmatpush1.msra.mxu0 0.0
    %389 = vmatprep.subr.mxu0 0.0
    %390 = vmatpush1.msra.mxu0 0.0
    %391 = vmatprep.subr.mxu0 0.0
    %392 = vmatpush1.msra.mxu0 0.0
    %393 = vmatprep.subr.mxu0 0.0
    %394 = vmatpush1.msra.mxu0 0.0
    %395 = vmatprep.subr.mxu0 0.0
    %396 = vmatpush1.msra.mxu0 0.0
    %397 = vmatprep.subr.mxu0 0.0
    %398 = vmatpush1.msra.mxu0 0.0
    %399 = vmatprep.subr.mxu0 0.0
    %400 = vmatpush1.msra.mxu0 0.0
    %401 = vmatprep.subr.mxu0 0.0
    %402 = vmatpush1.msra.mxu0 0.0
    %403 = vmatprep.subr.mxu0 0.0
    %404 = vmatpush1.msra.mxu0 0.0
    %405 = vmatprep.subr.mxu0 0.0
    %406 = vmatpush1.msra.mxu0 0.0
    %407 = vmatprep.subr.mxu0 0.0
    %408 = vmatpush1.msra.mxu0 0.0
    %409 = vmatprep.subr.mxu0 0.0
    %410 = vmatpush1.msra.mxu0 0.0
    %411 = vmatprep.mubr.f32.mxu0 0.0
    %412 = vmatmul.mubr.f32.gmra.mrb[0].mxu0 %v322
    %v413 = vpop.f32.mrb[0].mxu0
    %v414 = vadd.f32 %v345, %v413
    %v415 = vpop.f32.mrb[0].mxu0
    %416 = vmatprep.mubr.f32.mxu0 0.0
    %417 = vmatmul.mubr.f32.gmra.mrb[0].mxu0 %v323
    %v418 = vpop.f32.mrb[0].mxu0
    %v419 = vadd.f32 %v345, %v418
    %v420 = vpop.f32.mrb[0].mxu0
    %421 = vdwg.mxu0
    %v422 = vmax.f32 %v414, 0.0
    %v423 = vmax.f32 %v419, 0.0
    %v424 = vld [vmem:[#allocation11] sm:$0xff]
    %v425 = vld [vmem:[#allocation11 + $0x8] sm:$0xff]
    %v426 = vld [vmem:[#allocation11 + $0x10] sm:$0xff]
    %v427 = vld [vmem:[#allocation11 + $0x18] sm:$0xff]
    %v428 = vld [vmem:[#allocation11 + $0x20] sm:$0xff]
    %v429 = vld [vmem:[#allocation11 + $0x28] sm:$0xff]
    %v430 = vld [vmem:[#allocation11 + $0x30] sm:$0xff]
    %v431 = vld [vmem:[#allocation11 + $0x38] sm:$0xff]
    %v432 = vld [vmem:[#allocation11 + $0x40] sm:$0xff]
    %v433 = vld [vmem:[#allocation11 + $0x48] sm:$0xff]
    %v434 = vld [vmem:[#allocation11 + $0x50] sm:$0xff]
    %v435 = vld [vmem:[#allocation11 + $0x58] sm:$0xff]
    %v436 = vld [vmem:[#allocation11 + $0x60] sm:$0xff]
    %v437 = vld [vmem:[#allocation11 + $0x68] sm:$0xff]
    %v438 = vld [vmem:[#allocation11 + $0x70] sm:$0xff]
    %v439 = vld [vmem:[#allocation11 + $0x78] sm:$0xff]
    %v440 = vld [vmem:[%s8] sm:$0x1]
    %v442 = vlaneseq
    %v443 = vshrl.u32 %v442, 7
    %v444 = vsub.s32 0, %v443
    %v445 = vrot.slane %v440, %v444
    %447 = vmatprep.subr.mxu0 0.0
    %448 = vmatpush1.msra.mxu0 %v424
    %449 = vmatprep.subr.mxu0 0.0
    %450 = vmatpush1.msra.mxu0 %v425
    %451 = vmatprep.subr.mxu0 0.0
    %452 = vmatpush1.msra.mxu0 %v426
    %453 = vmatprep.subr.mxu0 0.0
    %454 = vmatpush1.msra.mxu0 %v427
    %455 = vmatprep.subr.mxu0 0.0
    %456 = vmatpush1.msra.mxu0 %v428
    %457 = vmatprep.subr.mxu0 0.0
    %458 = vmatpush1.msra.mxu0 %v429
    %459 = vmatprep.subr.mxu0 0.0
    %460 = vmatpush1.msra.mxu0 %v430
    %461 = vmatprep.subr.mxu0 0.0
    %462 = vmatpush1.msra.mxu0 %v431
    %463 = vmatprep.subr.mxu0 0.0
    %464 = vmatpush1.msra.mxu0 %v432
    %465 = vmatprep.subr.mxu0 0.0
    %466 = vmatpush1.msra.mxu0 %v433
    %467 = vmatprep.subr.mxu0 0.0
    %468 = vmatpush1.msra.mxu0 %v434
    %469 = vmatprep.subr.mxu0 0.0
    %470 = vmatpush1.msra.mxu0 %v435
    %471 = vmatprep.subr.mxu0 0.0
    %472 = vmatpush1.msra.mxu0 %v436
    %473 = vmatprep.subr.mxu0 0.0
    %474 = vmatpush1.msra.mxu0 %v437
    %475 = vmatprep.subr.mxu0 0.0
    %476 = vmatpush1.msra.mxu0 %v438
    %477 = vmatprep.subr.mxu0 0.0
    %478 = vmatpush1.msra.mxu0 %v439
    %479 = vmatprep.subr.mxu0 0.0
    %480 = vmatpush1.msra.mxu0 0.0
    %481 = vmatprep.subr.mxu0 0.0
    %482 = vmatpush1.msra.mxu0 0.0
    %483 = vmatprep.subr.mxu0 0.0
    %484 = vmatpush1.msra.mxu0 0.0
    %485 = vmatprep.subr.mxu0 0.0
    %486 = vmatpush1.msra.mxu0 0.0
    %487 = vmatprep.subr.mxu0 0.0
    %488 = vmatpush1.msra.mxu0 0.0
    %489 = vmatprep.subr.mxu0 0.0
    %490 = vmatpush1.msra.mxu0 0.0
    %491 = vmatprep.subr.mxu0 0.0
    %492 = vmatpush1.msra.mxu0 0.0
    %493 = vmatprep.subr.mxu0 0.0
    %494 = vmatpush1.msra.mxu0 0.0
    %495 = vmatprep.subr.mxu0 0.0
    %496 = vmatpush1.msra.mxu0 0.0
    %497 = vmatprep.subr.mxu0 0.0
    %498 = vmatpush1.msra.mxu0 0.0
    %499 = vmatprep.subr.mxu0 0.0
    %500 = vmatpush1.msra.mxu0 0.0
    %501 = vmatprep.subr.mxu0 0.0
    %502 = vmatpush1.msra.mxu0 0.0
    %503 = vmatprep.subr.mxu0 0.0
    %504 = vmatpush1.msra.mxu0 0.0
    %505 = vmatprep.subr.mxu0 0.0
    %506 = vmatpush1.msra.mxu0 0.0
    %507 = vmatprep.subr.mxu0 0.0
    %508 = vmatpush1.msra.mxu0 0.0
    %509 = vmatprep.subr.mxu0 0.0
    %510 = vmatpush1.msra.mxu0 0.0
    %511 = vmatprep.mubr.f32.mxu0 0.0
    %512 = vmatmul.mubr.f32.gmra.mrb[0].mxu0 %v422
    %v513 = vpop.f32.mrb[0].mxu0
    %v514 = vadd.f32 %v445, %v513
    %v515 = vpop.f32.mrb[0].mxu0
    %516 = vmatprep.mubr.f32.mxu0 0.0
    %517 = vmatmul.mubr.f32.gmra.mrb[0].mxu0 %v423
    %v518 = vpop.f32.mrb[0].mxu0
    %v519 = vadd.f32 %v445, %v518
    %v520 = vpop.f32.mrb[0].mxu0
    %521 = vdwg.mxu0
    %v522 = vadd.f32 %v320, %v514
    %v523 = vadd.f32 %v321, %v519
    %v524 = vmax.f32 %v522, 0.0
    %v525 = vmax.f32 %v523, 0.0
    %s526 = scalar_lea.vmem [#allocation10], 128
    %v527 = vld [vmem:[%s526] sm:$0xff]
    %v528 = vld [vmem:[%s526 + $0x8] sm:$0xff]
    %v529 = vld [vmem:[%s526 + $0x10] sm:$0xff]
    %v530 = vld [vmem:[%s526 + $0x18] sm:$0xff]
    %v531 = vld [vmem:[%s526 + $0x20] sm:$0xff]
    %v532 = vld [vmem:[%s526 + $0x28] sm:$0xff]
    %v533 = vld [vmem:[%s526 + $0x30] sm:$0xff]
    %v534 = vld [vmem:[%s526 + $0x38] sm:$0xff]
    %v535 = vld [vmem:[%s526 + $0x40] sm:$0xff]
    %v536 = vld [vmem:[%s526 + $0x48] sm:$0xff]
    %v537 = vld [vmem:[%s526 + $0x50] sm:$0xff]
    %v538 = vld [vmem:[%s526 + $0x58] sm:$0xff]
    %v539 = vld [vmem:[%s526 + $0x60] sm:$0xff]
    %v540 = vld [vmem:[%s526 + $0x68] sm:$0xff]
    %v541 = vld [vmem:[%s526 + $0x70] sm:$0xff]
    %v542 = vld [vmem:[%s526 + $0x78] sm:$0xff]
    %s543 = scalar_lea.vmem %s6, 1
    %v544 = vld [vmem:[%s543] sm:$0x1]
    %v546 = vlaneseq
    %v547 = vshrl.u32 %v546, 7
    %v548 = vsub.s32 0, %v547
    %v549 = vrot.slane %v544, %v548
    %551 = vmatprep.subr.mxu0 0.0
    %552 = vmatpush1.msra.mxu0 %v527
    %553 = vmatprep.subr.mxu0 0.0
    %554 = vmatpush1.msra.mxu0 %v528
    %555 = vmatprep.subr.mxu0 0.0
    %556 = vmatpush1.msra.mxu0 %v529
    %557 = vmatprep.subr.mxu0 0.0
    %558 = vmatpush1.msra.mxu0 %v530
    %559 = vmatprep.subr.mxu0 0.0
    %560 = vmatpush1.msra.mxu0 %v531
    %561 = vmatprep.subr.mxu0 0.0
    %562 = vmatpush1.msra.mxu0 %v532
    %563 = vmatprep.subr.mxu0 0.0
    %564 = vmatpush1.msra.mxu0 %v533
    %565 = vmatprep.subr.mxu0 0.0
    %566 = vmatpush1.msra.mxu0 %v534
    %567 = vmatprep.subr.mxu0 0.0
    %568 = vmatpush1.msra.mxu0 %v535
    %569 = vmatprep.subr.mxu0 0.0
    %570 = vmatpush1.msra.mxu0 %v536
    %571 = vmatprep.subr.mxu0 0.0
    %572 = vmatpush1.msra.mxu0 %v537
    %573 = vmatprep.subr.mxu0 0.0
    %574 = vmatpush1.msra.mxu0 %v538
    %575 = vmatprep.subr.mxu0 0.0
    %576 = vmatpush1.msra.mxu0 %v539
    %577 = vmatprep.subr.mxu0 0.0
    %578 = vmatpush1.msra.mxu0 %v540
    %579 = vmatprep.subr.mxu0 0.0
    %580 = vmatpush1.msra.mxu0 %v541
    %581 = vmatprep.subr.mxu0 0.0
    %582 = vmatpush1.msra.mxu0 %v542
    %583 = vmatprep.subr.mxu0 0.0
    %584 = vmatpush1.msra.mxu0 0.0
    %585 = vmatprep.subr.mxu0 0.0
    %586 = vmatpush1.msra.mxu0 0.0
    %587 = vmatprep.subr.mxu0 0.0
    %588 = vmatpush1.msra.mxu0 0.0
    %589 = vmatprep.subr.mxu0 0.0
    %590 = vmatpush1.msra.mxu0 0.0
    %591 = vmatprep.subr.mxu0 0.0
    %592 = vmatpush1.msra.mxu0 0.0
    %593 = vmatprep.subr.mxu0 0.0
    %594 = vmatpush1.msra.mxu0 0.0
    %595 = vmatprep.subr.mxu0 0.0
    %596 = vmatpush1.msra.mxu0 0.0
    %597 = vmatprep.subr.mxu0 0.0
    %598 = vmatpush1.msra.mxu0 0.0
    %599 = vmatprep.subr.mxu0 0.0
    %600 = vmatpush1.msra.mxu0 0.0
    %601 = vmatprep.subr.mxu0 0.0
    %602 = vmatpush1.msra.mxu0 0.0
    %603 = vmatprep.subr.mxu0 0.0
    %604 = vmatpush1.msra.mxu0 0.0
    %605 = vmatprep.subr.mxu0 0.0
    %606 = vmatpush1.msra.mxu0 0.0
    %607 = vmatprep.subr.mxu0 0.0
    %608 = vmatpush1.msra.mxu0 0.0
    %609 = vmatprep.subr.mxu0 0.0
    %610 = vmatpush1.msra.mxu0 0.0
    %611 = vmatprep.subr.mxu0 0.0
    %612 = vmatpush1.msra.mxu0 0.0
    %613 = vmatprep.subr.mxu0 0.0
    %614 = vmatpush1.msra.mxu0 0.0
    %615 = vmatprep.mubr.f32.mxu0 0.0
    %616 = vmatmul.mubr.f32.gmra.mrb[0].mxu0 %v524
    %v617 = vpop.f32.mrb[0].mxu0
    %v618 = vadd.f32 %v549, %v617
    %v619 = vpop.f32.mrb[0].mxu0
    %620 = vmatprep.mubr.f32.mxu0 0.0
    %621 = vmatmul.mubr.f32.gmra.mrb[0].mxu0 %v525
    %v622 = vpop.f32.mrb[0].mxu0
    %v623 = vadd.f32 %v549, %v622
    %v624 = vpop.f32.mrb[0].mxu0
    %625 = vdwg.mxu0
    %v626 = vmax.f32 %v618, 0.0
    %v627 = vmax.f32 %v623, 0.0
    %s628 = scalar_lea.vmem [#allocation11], 128
    %v629 = vld [vmem:[%s628] sm:$0xff]
    %v630 = vld [vmem:[%s628 + $0x8] sm:$0xff]
    %v631 = vld [vmem:[%s628 + $0x10] sm:$0xff]
    %v632 = vld [vmem:[%s628 + $0x18] sm:$0xff]
    %v633 = vld [vmem:[%s628 + $0x20] sm:$0xff]
    %v634 = vld [vmem:[%s628 + $0x28] sm:$0xff]
    %v635 = vld [vmem:[%s628 + $0x30] sm:$0xff]
    %v636 = vld [vmem:[%s628 + $0x38] sm:$0xff]
    %v637 = vld [vmem:[%s628 + $0x40] sm:$0xff]
    %v638 = vld [vmem:[%s628 + $0x48] sm:$0xff]
    %v639 = vld [vmem:[%s628 + $0x50] sm:$0xff]
    %v640 = vld [vmem:[%s628 + $0x58] sm:$0xff]
    %v641 = vld [vmem:[%s628 + $0x60] sm:$0xff]
    %v642 = vld [vmem:[%s628 + $0x68] sm:$0xff]
    %v643 = vld [vmem:[%s628 + $0x70] sm:$0xff]
    %v644 = vld [vmem:[%s628 + $0x78] sm:$0xff]
    %s645 = scalar_lea.vmem %s8, 1
    %v646 = vld [vmem:[%s645] sm:$0x1]
    %v648 = vlaneseq
    %v649 = vshrl.u32 %v648, 7
    %v650 = vsub.s32 0, %v649
    %v651 = vrot.slane %v646, %v650
    %653 = vmatprep.subr.mxu0 0.0
    %654 = vmatpush1.msra.mxu0 %v629
    %655 = vmatprep.subr.mxu0 0.0
    %656 = vmatpush1.msra.mxu0 %v630
    %657 = vmatprep.subr.mxu0 0.0
    %658 = vmatpush1.msra.mxu0 %v631
    %659 = vmatprep.subr.mxu0 0.0
    %660 = vmatpush1.msra.mxu0 %v632
    %661 = vmatprep.subr.mxu0 0.0
    %662 = vmatpush1.msra.mxu0 %v633
    %663 = vmatprep.subr.mxu0 0.0
    %664 = vmatpush1.msra.mxu0 %v634
    %665 = vmatprep.subr.mxu0 0.0
    %666 = vmatpush1.msra.mxu0 %v635
    %667 = vmatprep.subr.mxu0 0.0
    %668 = vmatpush1.msra.mxu0 %v636
    %669 = vmatprep.subr.mxu0 0.0
    %670 = vmatpush1.msra.mxu0 %v637
    %671 = vmatprep.subr.mxu0 0.0
    %672 = vmatpush1.msra.mxu0 %v638
    %673 = vmatprep.subr.mxu0 0.0
    %674 = vmatpush1.msra.mxu0 %v639
    %675 = vmatprep.subr.mxu0 0.0
    %676 = vmatpush1.msra.mxu0 %v640
    %677 = vmatprep.subr.mxu0 0.0
    %678 = vmatpush1.msra.mxu0 %v641
    %679 = vmatprep.subr.mxu0 0.0
    %680 = vmatpush1.msra.mxu0 %v642
    %681 = vmatprep.subr.mxu0 0.0
    %682 = vmatpush1.msra.mxu0 %v643
    %683 = vmatprep.subr.mxu0 0.0
    %684 = vmatpush1.msra.mxu0 %v644
    %685 = vmatprep.subr.mxu0 0.0
    %686 = vmatpush1.msra.mxu0 0.0
    %687 = vmatprep.subr.mxu0 0.0
    %688 = vmatpush1.msra.mxu0 0.0
    %689 = vmatprep.subr.mxu0 0.0
    %690 = vmatpush1.msra.mxu0 0.0
    %691 = vmatprep.subr.mxu0 0.0
    %692 = vmatpush1.msra.mxu0 0.0
    %693 = vmatprep.subr.mxu0 0.0
    %694 = vmatpush1.msra.mxu0 0.0
    %695 = vmatprep.subr.mxu0 0.0
    %696 = vmatpush1.msra.mxu0 0.0
    %697 = vmatprep.subr.mxu0 0.0
    %698 = vmatpush1.msra.mxu0 0.0
    %699 = vmatprep.subr.mxu0 0.0
    %700 = vmatpush1.msra.mxu0 0.0
    %701 = vmatprep.subr.mxu0 0.0
    %702 = vmatpush1.msra.mxu0 0.0
    %703 = vmatprep.subr.mxu0 0.0
    %704 = vmatpush1.msra.mxu0 0.0
    %705 = vmatprep.subr.mxu0 0.0
    %706 = vmatpush1.msra.mxu0 0.0
    %707 = vmatprep.subr.mxu0 0.0
    %708 = vmatpush1.msra.mxu0 0.0
    %709 = vmatprep.subr.mxu0 0.0
    %710 = vmatpush1.msra.mxu0 0.0
    %711 = vmatprep.subr.mxu0 0.0
    %712 = vmatpush1.msra.mxu0 0.0
    %713 = vmatprep.subr.mxu0 0.0
    %714 = vmatpush1.msra.mxu0 0.0
    %715 = vmatprep.subr.mxu0 0.0
    %716 = vmatpush1.msra.mxu0 0.0
    %717 = vmatprep.mubr.f32.mxu0 0.0
    %718 = vmatmul.mubr.f32.gmra.mrb[0].mxu0 %v626
    %v719 = vpop.f32.mrb[0].mxu0
    %v720 = vadd.f32 %v651, %v719
    %v721 = vpop.f32.mrb[0].mxu0
    %722 = vmatprep.mubr.f32.mxu0 0.0
    %723 = vmatmul.mubr.f32.gmra.mrb[0].mxu0 %v627
    %v724 = vpop.f32.mrb[0].mxu0
    %v725 = vadd.f32 %v651, %v724
    %v726 = vpop.f32.mrb[0].mxu0
    %727 = vdwg.mxu0
    %v728 = vadd.f32 %v522, %v720
    %v729 = vadd.f32 %v523, %v725
    %v730 = vmax.f32 %v728, 0.0
    %v731 = vmax.f32 %v729, 0.0
    %v732 = vld [vmem:[#allocation13] sm:$0xff]
    %v733 = vld [vmem:[#allocation13 + $0x8] sm:$0xff]
    %v734 = vld [vmem:[#allocation13 + $0x10] sm:$0xff]
    %v735 = vld [vmem:[#allocation13 + $0x18] sm:$0xff]
    %v736 = vld [vmem:[#allocation13 + $0x20] sm:$0xff]
    %v737 = vld [vmem:[#allocation13 + $0x28] sm:$0xff]
    %v738 = vld [vmem:[#allocation13 + $0x30] sm:$0xff]
    %v739 = vld [vmem:[#allocation13 + $0x38] sm:$0xff]
    %v740 = vld [vmem:[#allocation13 + $0x40] sm:$0xff]
    %v741 = vld [vmem:[#allocation13 + $0x48] sm:$0xff]
    %v742 = vld [vmem:[#allocation13 + $0x50] sm:$0xff]
    %v743 = vld [vmem:[#allocation13 + $0x58] sm:$0xff]
    %v744 = vld [vmem:[#allocation13 + $0x60] sm:$0xff]
    %v745 = vld [vmem:[#allocation13 + $0x68] sm:$0xff]
    %v746 = vld [vmem:[#allocation13 + $0x70] sm:$0xff]
    %v747 = vld [vmem:[#allocation13 + $0x78] sm:$0xff]
    %v748 = vld [vmem:[%s10] sm:$0x1]
    %v750 = vlaneseq
    %v751 = vshrl.u32 %v750, 7
    %v752 = vsub.s32 0, %v751
    %v753 = vrot.slane %v748, %v752
    %755 = vmatprep.subr.mxu0 0.0
    %756 = vmatpush1.msra.mxu0 %v732
    %757 = vmatprep.subr.mxu0 0.0
    %758 = vmatpush1.msra.mxu0 %v733
    %759 = vmatprep.subr.mxu0 0.0
    %760 = vmatpush1.msra.mxu0 %v734
    %761 = vmatprep.subr.mxu0 0.0
    %762 = vmatpush1.msra.mxu0 %v735
    %763 = vmatprep.subr.mxu0 0.0
    %764 = vmatpush1.msra.mxu0 %v736
    %765 = vmatprep.subr.mxu0 0.0
    %766 = vmatpush1.msra.mxu0 %v737
    %767 = vmatprep.subr.mxu0 0.0
    %768 = vmatpush1.msra.mxu0 %v738
    %769 = vmatprep.subr.mxu0 0.0
    %770 = vmatpush1.msra.mxu0 %v739
    %771 = vmatprep.subr.mxu0 0.0
    %772 = vmatpush1.msra.mxu0 %v740
    %773 = vmatprep.subr.mxu0 0.0
    %774 = vmatpush1.msra.mxu0 %v741
    %775 = vmatprep.subr.mxu0 0.0
    %776 = vmatpush1.msra.mxu0 %v742
    %777 = vmatprep.subr.mxu0 0.0
    %778 = vmatpush1.msra.mxu0 %v743
    %779 = vmatprep.subr.mxu0 0.0
    %780 = vmatpush1.msra.mxu0 %v744
    %781 = vmatprep.subr.mxu0 0.0
    %782 = vmatpush1.msra.mxu0 %v745
    %783 = vmatprep.subr.mxu0 0.0
    %784 = vmatpush1.msra.mxu0 %v746
    %785 = vmatprep.subr.mxu0 0.0
    %786 = vmatpush1.msra.mxu0 %v747
    %787 = vmatprep.subr.mxu0 0.0
    %788 = vmatpush1.msra.mxu0 0.0
    %789 = vmatprep.subr.mxu0 0.0
    %790 = vmatpush1.msra.mxu0 0.0
    %791 = vmatprep.subr.mxu0 0.0
    %792 = vmatpush1.msra.mxu0 0.0
    %793 = vmatprep.subr.mxu0 0.0
    %794 = vmatpush1.msra.mxu0 0.0
    %795 = vmatprep.subr.mxu0 0.0
    %796 = vmatpush1.msra.mxu0 0.0
    %797 = vmatprep.subr.mxu0 0.0
    %798 = vmatpush1.msra.mxu0 0.0
    %799 = vmatprep.subr.mxu0 0.0
    %800 = vmatpush1.msra.mxu0 0.0
    %801 = vmatprep.subr.mxu0 0.0
    %802 = vmatpush1.msra.mxu0 0.0
    %803 = vmatprep.subr.mxu0 0.0
    %804 = vmatpush1.msra.mxu0 0.0
    %805 = vmatprep.subr.mxu0 0.0
    %806 = vmatpush1.msra.mxu0 0.0
    %807 = vmatprep.subr.mxu0 0.0
    %808 = vmatpush1.msra.mxu0 0.0
    %809 = vmatprep.subr.mxu0 0.0
    %810 = vmatpush1.msra.mxu0 0.0
    %811 = vmatprep.subr.mxu0 0.0
    %812 = vmatpush1.msra.mxu0 0.0
    %813 = vmatprep.subr.mxu0 0.0
    %814 = vmatpush1.msra.mxu0 0.0
    %815 = vmatprep.subr.mxu0 0.0
    %816 = vmatpush1.msra.mxu0 0.0
    %817 = vmatprep.subr.mxu0 0.0
    %818 = vmatpush1.msra.mxu0 0.0
    %819 = vmatprep.mubr.f32.mxu0 0.0
    %820 = vmatmul.mubr.f32.gmra.mrb[0].mxu0 %v730
    %v821 = vpop.f32.mrb[0].mxu0
    %v822 = vadd.f32 %v753, %v821
    %v823 = vpop.f32.mrb[0].mxu0
    %824 = vmatprep.mubr.f32.mxu0 0.0
    %825 = vmatmul.mubr.f32.gmra.mrb[0].mxu0 %v731
    %v826 = vpop.f32.mrb[0].mxu0
    %v827 = vadd.f32 %v753, %v826
    %v828 = vpop.f32.mrb[0].mxu0
    %829 = vdwg.mxu0
    %830 = vst [vmem:[#allocation14] sm:$0xff] %v822
    %831 = vst [vmem:[#allocation14 + $0x8] sm:$0xff] %v827
    // Predicated region
    $region74: #{tpu_custom_call.1} parent=1 // pred_check
      _
    $region75: #{tpu_custom_call.1} parent=1 // pred_check_branch
      %833 = sbr.rel (0) target = $region77
    $region76: #{tpu_custom_call.1} parent=1 // pred_region
      %s835 = ssub.s32 256, 256
      %836 = vsyncadd [#allocation4], %s835
      %s837 = sshll.u32 [#allocation14], 4
      %s838 = int_to_ptr.vmem [resolvable:$true] %s837
      %843 = dma.vmem_to_hbm [thread:$0]  %s838, 256, %s11, [#allocation4], 128, 128, 8
    $region77: #{tpu_custom_call.1} parent=1 // pred_fallthru
      _
    // Predicated region
    $region78: #{tpu_custom_call.1} parent=1 // pred_check
      _
    $region79: #{tpu_custom_call.1} parent=1 // pred_check_branch
      %845 = sbr.rel (0) target = $region81
    $region80: #{tpu_custom_call.1} parent=1 // pred_region
      %846 = dma.done [#allocation4], 256
    $region81: #{tpu_custom_call.1} parent=1 // pred_fallthru
      _
    %847 = vsyncpa [#allocation3], 1
    %848 = vsyncpa [#allocation6], 1
    %849 = vsyncpa [#allocation9], 1
    %850 = vsyncpa [#allocation12], 1
    %851 = vsyncpa [#allocation4], 1

</llo_original>
